<compile_context>
chip_gen: v7x
topology: tpu7x:2x2x1
jax: 0.10.0
libtpu: 0.0.40
codegen_flags: <defaults>
</compile_context>

<pallas_src>
import functools

import jax
import jax.numpy as jnp
from jax.experimental import pallas as pl
from jax.experimental.pallas import tpu as pltpu

_H1, _H2 = 64, 32        # hidden sizes fixed by the PyTorch module
_LANES = 128
_PAD = 128               # padded hidden width (lane-dense)
_BIAS_ROWS = 16          # one shared bias block (row0=b1, row1=b2, row2=b3)


def _round_up(n, m):
    return ((n + m - 1) // m) * m


def _layout(state_dim):
    """Row layout of the packed (R, 128) per-net bf16 parameter slab.

    All offsets are multiples of 16 (bf16 packs 16 sublanes per vreg), so every
    in-kernel slice is an aligned, unmasked load.
    """
    r1 = _round_up(state_dim, 16)
    off_w1 = 0
    off_w2 = off_w1 + r1       # (128,128): rows >= 64 zero, lanes >= 32 zero
    off_w3 = off_w2 + _PAD     # (128,128): rows >= 32 zero, lanes >= A zero
    off_b = off_w3 + _PAD      # bias block: row0=b1, row1=b2, row2=b3
    rows = off_b + _BIAS_ROWS
    return r1, (off_w1, off_w2, off_w3, off_b), rows


# ---------------------------------------------------------------------------
# Kernel
# ---------------------------------------------------------------------------
def _actor_kernel(idx_ref, x_ref, p_ref, o_ref, *, state_dim, n_actions):
    del idx_ref  # net selection already happened via the params BlockSpec DMA
    r1, (ow1, ow2, ow3, ob), _ = _layout(state_dim)

    w1 = p_ref[ow1:ow1 + r1, :]            # bf16 (r1, 128), lanes >= 64 zero
    w2 = p_ref[ow2:ow2 + _PAD, :]          # bf16 (128, 128)
    w3 = p_ref[ow3:ow3 + _PAD, :]          # bf16 (128, 128)
    biases = p_ref[ob:ob + 8, :].astype(jnp.float32)   # (8, 128) f32
    b1 = biases[0:1, :]
    b2 = biases[1:2, :]
    b3 = biases[2:3, :]

    x = x_ref[...]                         # bf16 (1, r1), zero-padded

    # Layer 1 + tanh: padded lanes see w1-col=0, b1-lane=0 -> tanh(0)=0.
    h1 = jnp.tanh(jnp.dot(x, w1, preferred_element_type=jnp.float32) + b1)
    # Layer 2 + tanh (lane-dense: padded rows of w2 are zero).
    h2 = jnp.tanh(jnp.dot(h1.astype(jnp.bfloat16), w2,
                          preferred_element_type=jnp.float32) + b2)
    # Layer 3 logits.
    logits = jnp.dot(h2.astype(jnp.bfloat16), w3,
                     preferred_element_type=jnp.float32) + b3

    # Softmax over a lane-dense vreg; padded lanes masked to -inf (exp -> 0).
    lane = jax.lax.broadcasted_iota(jnp.int32, logits.shape, 1)
    logits = jnp.where(lane < n_actions, logits, -jnp.inf)
    z = logits - jnp.max(logits, axis=-1, keepdims=True)
    e = jnp.exp(z)
    o_ref[...] = e / jnp.sum(e, axis=-1, keepdims=True)   # exact divide


# ---------------------------------------------------------------------------
# Wrapper
# ---------------------------------------------------------------------------
def actor_forward(x, packed_params, *, state_dim, n_actions):
    """x: (state_dim,) float32. packed_params: (n_states, R, 128) bfloat16.

    Returns softmax action probabilities of shape (n_actions,), float32.
    """
    n_states, rows, lanes = packed_params.shape
    r1, _, rows_expect = _layout(state_dim)
    assert rows == rows_expect and lanes == _LANES

    # int(X[-1]) semantics (truncation toward zero); clamped for OOB safety.
    # NOTE: NaN/overflowing floats give an implementation-defined index here,
    # whereas PyTorch's int() would raise.
    idx = jnp.clip(x[-1].astype(jnp.int32), 0, n_states - 1).reshape(1)

    # Zero-pad x to the 16-aligned row count of the first weight slab.
    x_pad = jnp.zeros((1, r1), jnp.bfloat16).at[0, :state_dim].set(
        x.astype(jnp.bfloat16))

    kernel = functools.partial(
        _actor_kernel, state_dim=state_dim, n_actions=n_actions)

    grid_spec = pltpu.PrefetchScalarGridSpec(
        num_scalar_prefetch=1,
        grid=(1,),
        in_specs=[
            pl.BlockSpec((1, r1), lambda i, idx_ref: (0, 0)),       # x
            # Only the selected net's slab is DMA'd (leading dim squeezed).
            pl.BlockSpec((None, rows, _LANES),
                         lambda i, idx_ref: (idx_ref[0], 0, 0)),    # params
        ],
        out_specs=pl.BlockSpec((1, _LANES), lambda i, idx_ref: (0, 0)),
    )

    out = pl.pallas_call(
        kernel,
        out_shape=jax.ShapeDtypeStruct((1, _LANES), jnp.float32),
        grid_spec=grid_spec,
        compiler_params=pltpu.CompilerParams(
            dimension_semantics=("arbitrary",)),
    )(idx, x_pad, packed_params)
    return out[0, :n_actions]


# ---------------------------------------------------------------------------
# Parameter construction / packing
# ---------------------------------------------------------------------------
def init_actor_params(key, state_dim, n_actions, n_states):
    """PyTorch nn.Linear-style init (U[-1/sqrt(fan_in), 1/sqrt(fan_in)]).

    Weights stored as (in, out) per layer, stacked along n_states. f32.
    """
    dims = [(state_dim, _H1), (_H1, _H2), (_H2, n_actions)]
    params = []
    for fan_in, fan_out in dims:
        key, kw, kb = jax.random.split(key, 3)
        bound = 1.0 / jnp.sqrt(jnp.float32(fan_in))
        w = jax.random.uniform(kw, (n_states, fan_in, fan_out),
                               jnp.float32, -bound, bound)
        b = jax.random.uniform(kb, (n_states, 1, fan_out),
                               jnp.float32, -bound, bound)
        params += [w, b]
    return tuple(params)


def pack_actor_params(params):
    """Pack (w1,b1,w2,b2,w3,b3) into one lane-dense (n_states, R, 128) bf16 slab."""
    w1, b1, w2, b2, w3, b3 = params
    n_states, state_dim, h1d = w1.shape
    h2d = w2.shape[-1]
    n_actions = w3.shape[-1]
    assert (h1d, h2d) == (_H1, _H2)
    assert max(h1d, h2d, n_actions) <= _LANES

    _, (ow1, ow2, ow3, ob), rows = _layout(state_dim)
    packed = jnp.zeros((n_states, rows, _LANES), jnp.float32)
    packed = packed.at[:, ow1:ow1 + state_dim, :_H1].set(w1)
    packed = packed.at[:, ow2:ow2 + _H1, :_H2].set(w2)
    packed = packed.at[:, ow3:ow3 + _H2, :n_actions].set(w3)
    packed = packed.at[:, ob + 0, :_H1].set(b1[:, 0, :])
    packed = packed.at[:, ob + 1, :_H2].set(b2[:, 0, :])
    packed = packed.at[:, ob + 2, :n_actions].set(b3[:, 0, :])
    return packed.astype(jnp.bfloat16)


def actor_reference(x, params):
    """Pure-JAX reference mirroring the intentional bf16 weight quantization."""
    def q(a):
        return a.astype(jnp.bfloat16).astype(jnp.float32)

    w1, b1, w2, b2, w3, b3 = [q(p) for p in params]
    i = int(x[-1])
    hp = jax.lax.Precision.HIGHEST
    xb = q(x)[None, :]
    h1 = jnp.tanh(jnp.dot(xb, w1[i], precision=hp) + b1[i])
    h2 = jnp.tanh(jnp.dot(q(h1), w2[i], precision=hp) + b2[i])
    logits = jnp.dot(q(h2), w3[i], precision=hp) + b3[i]
    return jax.nn.softmax(logits, axis=-1)[0]


if __name__ == "__main__":
    state_dim, n_actions, n_states = 8, 4, 3

    key = jax.random.PRNGKey(0)
    k_params, k_x = jax.random.split(key)
    params = init_actor_params(k_params, state_dim, n_actions, n_states)
    packed = pack_actor_params(params)

    x = jax.random.normal(k_x, (state_dim,), jnp.float32)
    # last element encodes the state-net index (valid int in [0, n_states))
    x = x.at[-1].set(1.0)

    fwd = jax.jit(functools.partial(
        actor_forward, state_dim=state_dim, n_actions=n_actions))
    out = jax.block_until_ready(fwd(x, packed))

    ref = actor_reference(x, params)
    assert out.shape == (n_actions,)
    assert jnp.allclose(out, ref, atol=5e-3, rtol=5e-3), (out, ref)
    assert jnp.allclose(jnp.sum(out), 1.0, atol=1e-5)

    print("KERNEL_OK")
</pallas_src>

<mosaic_0001>
module attributes {stable_mosaic.version = 11 : i64} {
  func.func @_actor_kernel(%arg0: i32, %arg1: memref<1xi32, #tpu.memory_space<smem>>, %arg2: memref<1x16xbf16, #tpu.memory_space<vmem>>, %arg3: memref<1x288x128xbf16, #tpu.memory_space<vmem>>, %arg4: memref<1x128xf32, #tpu.memory_space<vmem>>) attributes {dimension_semantics = [#tpu.dimension_semantics<arbitrary>], iteration_bounds = array<i64: 1>, scalar_prefetch = 1 : i64, scratch_operands = 0 : i64, tpu.core_type = #tpu.core_type<tc>, window_params = [{pipeline_mode = #tpu.pipeline_mode<synchronous>, transform_indices = @transform_0, window_bounds = array<i64: 1, 16>}, {transform_indices = @transform_1, window_bounds = array<i64: 1, 288, 128>}, {pipeline_mode = #tpu.pipeline_mode<synchronous>, transform_indices = @transform_2, window_bounds = array<i64: 1, 128>}]} {
    %c0 = arith.constant 0 : index
    %c0_0 = arith.constant 0 : index
    %c0_1 = arith.constant 0 : index
    %0 = vector.load %arg3[%c0, %c0_0, %c0_1] : memref<1x288x128xbf16, #tpu.memory_space<vmem>>, vector<1x16x128xbf16>
    %1 = vector.shape_cast %0 : vector<1x16x128xbf16> to vector<16x128xbf16>
    %c0_2 = arith.constant 0 : index
    %c16 = arith.constant 16 : index
    %c0_3 = arith.constant 0 : index
    %2 = vector.load %arg3[%c0_2, %c16, %c0_3] : memref<1x288x128xbf16, #tpu.memory_space<vmem>>, vector<1x128x128xbf16>
    %3 = vector.shape_cast %2 : vector<1x128x128xbf16> to vector<128x128xbf16>
    %c0_4 = arith.constant 0 : index
    %c144 = arith.constant 144 : index
    %c0_5 = arith.constant 0 : index
    %4 = vector.load %arg3[%c0_4, %c144, %c0_5] : memref<1x288x128xbf16, #tpu.memory_space<vmem>>, vector<1x128x128xbf16>
    %5 = vector.shape_cast %4 : vector<1x128x128xbf16> to vector<128x128xbf16>
    %c0_6 = arith.constant 0 : index
    %c272 = arith.constant 272 : index
    %c0_7 = arith.constant 0 : index
    %6 = vector.load %arg3[%c0_6, %c272, %c0_7] : memref<1x288x128xbf16, #tpu.memory_space<vmem>>, vector<1x8x128xbf16>
    %7 = vector.shape_cast %6 : vector<1x8x128xbf16> to vector<8x128xbf16>
    %8 = arith.extf %7 : vector<8x128xbf16> to vector<8x128xf32>
    %9 = vector.extract_strided_slice %8 {offsets = [0, 0], sizes = [1, 128], strides = [1, 1]} : vector<8x128xf32> to vector<1x128xf32>
    %10 = vector.extract_strided_slice %8 {offsets = [1, 0], sizes = [1, 128], strides = [1, 1]} : vector<8x128xf32> to vector<1x128xf32>
    %11 = vector.extract_strided_slice %8 {offsets = [2, 0], sizes = [1, 128], strides = [1, 1]} : vector<8x128xf32> to vector<1x128xf32>
    %c0_8 = arith.constant 0 : index
    %c0_9 = arith.constant 0 : index
    %12 = vector.load %arg2[%c0_8, %c0_9] : memref<1x16xbf16, #tpu.memory_space<vmem>>, vector<1x16xbf16>
    %cst = arith.constant dense<0.000000e+00> : vector<1x128xf32>
    %13 = tpu.matmul %12, %1, %cst {dimension_numbers = #tpu.dot_dimension_numbers<[1], [0], [0], [1], [0, 0, 1, 1], [], []>} : vector<1x16xbf16>, vector<16x128xbf16>, vector<1x128xf32> -> vector<1x128xf32>
    %14 = arith.addf %13, %9 : vector<1x128xf32>
    %15 = math.tanh %14 : vector<1x128xf32>
    %16 = arith.truncf %15 : vector<1x128xf32> to vector<1x128xbf16>
    %cst_10 = arith.constant dense<0.000000e+00> : vector<1x128xf32>
    %17 = tpu.matmul %16, %3, %cst_10 {dimension_numbers = #tpu.dot_dimension_numbers<[1], [0], [0], [1], [0, 0, 1, 1], [], []>} : vector<1x128xbf16>, vector<128x128xbf16>, vector<1x128xf32> -> vector<1x128xf32>
    %18 = arith.addf %17, %10 : vector<1x128xf32>
    %19 = math.tanh %18 : vector<1x128xf32>
    %20 = arith.truncf %19 : vector<1x128xf32> to vector<1x128xbf16>
    %cst_11 = arith.constant dense<0.000000e+00> : vector<1x128xf32>
    %21 = tpu.matmul %20, %5, %cst_11 {dimension_numbers = #tpu.dot_dimension_numbers<[1], [0], [0], [1], [0, 0, 1, 1], [], []>} : vector<1x128xbf16>, vector<128x128xbf16>, vector<1x128xf32> -> vector<1x128xf32>
    %22 = arith.addf %21, %11 : vector<1x128xf32>
    %23 = tpu.iota {dimensions = array<i32: 1>} : vector<1x128xi32>
    %c4_i32 = arith.constant 4 : i32
    %24 = vector.broadcast %c4_i32 : i32 to vector<1x128xi32>
    %25 = arith.cmpi slt, %23, %24 : vector<1x128xi32>
    %cst_12 = arith.constant 0xFF800000 : f32
    %26 = vector.broadcast %cst_12 : f32 to vector<1x128xf32>
    %27 = arith.select %25, %22, %26 : vector<1x128xi1>, vector<1x128xf32>
    %cst_13 = arith.constant dense<0xFF800000> : vector<1xf32>
    %28 = vector.multi_reduction <maximumf>, %27, %cst_13 [1] : vector<1x128xf32> to vector<1xf32>
    %29 = vector.shape_cast %28 : vector<1xf32> to vector<1x1xf32>
    %30 = vector.broadcast %29 : vector<1x1xf32> to vector<1x128xf32>
    %31 = arith.subf %27, %30 : vector<1x128xf32>
    %32 = math.exp %31 : vector<1x128xf32>
    %cst_14 = arith.constant dense<0.000000e+00> : vector<1xf32>
    %33 = vector.multi_reduction <add>, %32, %cst_14 [1] : vector<1x128xf32> to vector<1xf32>
    %34 = vector.shape_cast %33 : vector<1xf32> to vector<1x1xf32>
    %35 = vector.broadcast %34 : vector<1x1xf32> to vector<1x128xf32>
    %36 = arith.divf %32, %35 : vector<1x128xf32>
    %c0_15 = arith.constant 0 : index
    %c0_16 = arith.constant 0 : index
    %37 = vector.load %arg4[%c0_15, %c0_16] : memref<1x128xf32, #tpu.memory_space<vmem>>, vector<1x128xf32>
    tpu.vector_store %arg4[%c0_15, %c0_16], %36 {strides = array<i32>} : memref<1x128xf32, #tpu.memory_space<vmem>>, vector<1x128xf32>,
    return
  }
  func.func @transform_0(%arg0: i32, %arg1: memref<1xi32, #tpu.memory_space<smem>>) -> (i32, i32) {
    %c0_i32 = arith.constant 0 : i32
    %c0_i32_0 = arith.constant 0 : i32
    %c0_i32_1 = arith.constant 0 : i32
    return %c0_i32, %c0_i32_0 : i32, i32
  }
  func.func @transform_1(%arg0: i32, %arg1: memref<1xi32, #tpu.memory_space<smem>>) -> (i32, i32, i32) {
    %c0 = arith.constant 0 : index
    %0 = memref.load %arg1[%c0] : memref<1xi32, #tpu.memory_space<smem>>
    %c0_i32 = arith.constant 0 : i32
    %c0_i32_0 = arith.constant 0 : i32
    %c0_i32_1 = arith.constant 0 : i32
    return %0, %c0_i32, %c0_i32_0 : i32, i32, i32
  }
  func.func @transform_2(%arg0: i32, %arg1: memref<1xi32, #tpu.memory_space<smem>>) -> (i32, i32) {
    %c0_i32 = arith.constant 0 : i32
    %c0_i32_0 = arith.constant 0 : i32
    %c0_i32_1 = arith.constant 0 : i32
    return %c0_i32, %c0_i32_0 : i32, i32
  }
}

</mosaic_0001>

<llo_original>
// kernel: actor_forward.1
$region0: #{actor_forward.1}
  #allocation0 [shape = 'u32[]', space=smem, size = 0x4, offset = 0x4, fixed_abs, tag = 'smem constant byte address 0x4 - core index']
  #allocation1 [shape = 'u32[144,128]{1,0:T(1,128)}', space=vmem, size = 0x12000, scoped, tag = 'internal scratch']
  #allocation2 [shape = 's32[1]{0}', space=sflag, size = 0x4, scoped, tag = 'scoped memory for actor_forward.1']
  #allocation3 [shape = 's32[1]{0:T(128)S(6)}', space=smem, size = 0x200, scoped, tag = 'prefetched SMEM operand 0']
  %s0 = inlined_call_operand.<no memory space> [shape: s32[1], index: 0, kind: input, shape index: {}]
  %s1 = inlined_call_operand.vmem [shape: bf16[1,16], index: 1, kind: input, shape index: {}]
  %s2 = inlined_call_operand.hbm [shape: bf16[3,288,128], index: 2, kind: input, shape index: {}]
  %s3 = inlined_call_operand.vmem [shape: f32[1,128], index: 3, kind: output, shape index: {}]
  %s4 = sld [smem:[#allocation0]]
  $region22: #{actor_forward.1} parent=0
    _
  %s6 = ssub.s32 1, %s4
  %s7 = scalar_select 0, %s6, %s4
  %8 = sst [smem:[#allocation3]] %s0
  $region1: #{actor_forward.1} parent=0
    #allocation4 [shape = 'u8[73728]{0}', space=vmem, size = 0x12000, scoped, tag = 'input window, operand 2, single buffered']
    #allocation5 [shape = 's32[1]{0}', space=sflag, size = 0x4, scoped, tag = 'scoped memory for actor_forward.1']
    %9 = vsyncpa [#allocation5], 0
    // Predicated region
    $region2: #{actor_forward.1} parent=1 // pred_check
      _
    $region3: #{actor_forward.1} parent=1 // pred_check_branch
      %11 = sbr.rel (0) target = $region5
    $region4: #{actor_forward.1} parent=1 // pred_region
      _
    $region5: #{actor_forward.1} parent=1 // pred_fallthru
      _
    // Predicated region
    $region6: #{actor_forward.1} parent=1 // pred_check
      _
    $region7: #{actor_forward.1} parent=1 // pred_check_branch
      %13 = sbr.rel (0) target = $region9
    $region8: #{actor_forward.1} parent=1 // pred_region
      %s14 = sld [smem:[#allocation3]]
      %s16 = ssub.s32 2304, 2304
      %17 = vsyncadd [#allocation5], %s16
      %s18 = smul.addr %s14, 36
      %s19 = smul.addr %s18, 64
      %s20 = scalar_lea.hbm %s2, %s19
      %s21 = sshll.u32 [#allocation4], 4
      %s22 = int_to_ptr.vmem [resolvable:$true] %s21
      %27 = dma.hbm_to_vmem [thread:$0]  %s20, 2304, %s22, [#allocation5], 64, 64, 4
    $region9: #{actor_forward.1} parent=1 // pred_fallthru
      _
    // Predicated region
    $region10: #{actor_forward.1} parent=1 // pred_check
      _
    $region11: #{actor_forward.1} parent=1 // pred_check_branch
      %29 = sbr.rel (0) target = $region13
    $region12: #{actor_forward.1} parent=1 // pred_region
      %30 = dma.done [#allocation5], 2304
    $region13: #{actor_forward.1} parent=1 // pred_fallthru
      _
    %s31 = sld [smem:[#allocation3]]
    %v33 = vld [vmem:[#allocation4] sm:$0xf]
    %v34 = vld [vmem:[#allocation4 + $0x4] sm:$0xf]
    %v35 = vld [vmem:[#allocation4 + $0x8] sm:$0xf]
    %v36 = vld [vmem:[#allocation4 + $0xc] sm:$0xf]
    %v37 = vld [vmem:[#allocation4 + $0x10] sm:$0xf]
    %v38 = vld [vmem:[#allocation4 + $0x14] sm:$0xf]
    %v39 = vld [vmem:[#allocation4 + $0x18] sm:$0xf]
    %v40 = vld [vmem:[#allocation4 + $0x1c] sm:$0xf]
    %v41 = vld [vmem:[#allocation4 + $0x20] sm:$0xf]
    %v42 = vld [vmem:[#allocation4 + $0x24] sm:$0xf]
    %v43 = vld [vmem:[#allocation4 + $0x28] sm:$0xf]
    %v44 = vld [vmem:[#allocation4 + $0x2c] sm:$0xf]
    %v45 = vld [vmem:[#allocation4 + $0x30] sm:$0xf]
    %v46 = vld [vmem:[#allocation4 + $0x34] sm:$0xf]
    %v47 = vld [vmem:[#allocation4 + $0x38] sm:$0xf]
    %v48 = vld [vmem:[#allocation4 + $0x3c] sm:$0xf]
    %v49 = vld [vmem:[#allocation4 + $0x40] sm:$0xf]
    %v50 = vld [vmem:[#allocation4 + $0x44] sm:$0xf]
    %v51 = vld [vmem:[#allocation4 + $0x48] sm:$0xf]
    %v52 = vld [vmem:[#allocation4 + $0x4c] sm:$0xf]
    %v53 = vld [vmem:[#allocation4 + $0x50] sm:$0xf]
    %v54 = vld [vmem:[#allocation4 + $0x54] sm:$0xf]
    %v55 = vld [vmem:[#allocation4 + $0x58] sm:$0xf]
    %v56 = vld [vmem:[#allocation4 + $0x5c] sm:$0xf]
    %v57 = vld [vmem:[#allocation4 + $0x60] sm:$0xf]
    %v58 = vld [vmem:[#allocation4 + $0x64] sm:$0xf]
    %v59 = vld [vmem:[#allocation4 + $0x68] sm:$0xf]
    %v60 = vld [vmem:[#allocation4 + $0x6c] sm:$0xf]
    %v61 = vld [vmem:[#allocation4 + $0x70] sm:$0xf]
    %v62 = vld [vmem:[#allocation4 + $0x74] sm:$0xf]
    %v63 = vld [vmem:[#allocation4 + $0x78] sm:$0xf]
    %v64 = vld [vmem:[#allocation4 + $0x7c] sm:$0xf]
    %v65 = vld [vmem:[#allocation4 + $0x80] sm:$0xf]
    %v66 = vld [vmem:[#allocation4 + $0x84] sm:$0xf]
    %v67 = vld [vmem:[#allocation4 + $0x88] sm:$0xf]
    %v68 = vunpack.c.l.bf16 %v67
    %v69 = vld [vmem:[%s1] sm:$0x1]
    %v72 = vunpack.c.l.b16 %v33
    %v73 = vunpack.c.l.b16 %v34
    %v74 = vpack.c.b16 %v73, %v72
    %vm76 = vcmask 130048
    %v78 = vsel %vm76, %v69, 0
    %80 = vmatprep.subr.bf16.mxu0 0
    %81 = vmatpush1.bf16.msra.mxu0 %v74
    %82 = vmatprep.subr.bf16.mxu0 0
    %83 = vmatpush1.bf16.msra.mxu0 0
    %84 = vmatprep.subr.bf16.mxu0 0
    %85 = vmatpush1.bf16.msra.mxu0 0
    %86 = vmatprep.subr.bf16.mxu0 0
    %87 = vmatpush1.bf16.msra.mxu0 0
    %88 = vmatprep.subr.bf16.mxu0 0
    %89 = vmatpush1.bf16.msra.mxu0 0
    %90 = vmatprep.subr.bf16.mxu0 0
    %91 = vmatpush1.bf16.msra.mxu0 0
    %92 = vmatprep.subr.bf16.mxu0 0
    %93 = vmatpush1.bf16.msra.mxu0 0
    %94 = vmatprep.subr.bf16.mxu0 0
    %95 = vmatpush1.bf16.msra.mxu0 0
    %96 = vmatprep.subr.bf16.mxu0 0
    %97 = vmatpush1.bf16.msra.mxu0 0
    %98 = vmatprep.subr.bf16.mxu0 0
    %99 = vmatpush1.bf16.msra.mxu0 0
    %100 = vmatprep.subr.bf16.mxu0 0
    %101 = vmatpush1.bf16.msra.mxu0 0
    %102 = vmatprep.subr.bf16.mxu0 0
    %103 = vmatpush1.bf16.msra.mxu0 0
    %104 = vmatprep.subr.bf16.mxu0 0
    %105 = vmatpush1.bf16.msra.mxu0 0
    %106 = vmatprep.subr.bf16.mxu0 0
    %107 = vmatpush1.bf16.msra.mxu0 0
    %108 = vmatprep.subr.bf16.mxu0 0
    %109 = vmatpush1.bf16.msra.mxu0 0
    %110 = vmatprep.subr.bf16.mxu0 0
    %111 = vmatpush1.bf16.msra.mxu0 0
    %112 = vmatprep.mubr.bf16.mxu0 0
    %113 = vmatmul.mubr.bf16.gmra.mrb[0].mxu0 %v78
    %v114 = vpop.f32.mrb[0].mxu0
    %v115 = vadd.f32 %v68, %v114
    %v116 = vpop.f32.mrb[0].mxu0
    %v117 = vpop.f32.mrb[0].mxu0
    %v118 = vpop.f32.mrb[0].mxu0
    %119 = vdwg.mxu0
    %v120 = vtanh.pop %v115
    %v121 = vpack.c.bf16 %v120, %v120
    %v138 = vunpack.c.l.b16 %v35
    %v139 = vunpack.c.l.b16 %v36
    %v140 = vunpack.c.l.b16 %v37
    %v141 = vunpack.c.l.b16 %v38
    %v142 = vunpack.c.l.b16 %v39
    %v143 = vunpack.c.l.b16 %v40
    %v144 = vunpack.c.l.b16 %v41
    %v145 = vunpack.c.l.b16 %v42
    %v146 = vunpack.c.l.b16 %v43
    %v147 = vunpack.c.l.b16 %v44
    %v148 = vunpack.c.l.b16 %v45
    %v149 = vunpack.c.l.b16 %v46
    %v150 = vunpack.c.l.b16 %v47
    %v151 = vunpack.c.l.b16 %v48
    %v152 = vunpack.c.l.b16 %v49
    %v153 = vunpack.c.l.b16 %v50
    %v154 = vpack.c.b16 %v139, %v138
    %v155 = vpack.c.b16 %v141, %v140
    %v156 = vpack.c.b16 %v143, %v142
    %v157 = vpack.c.b16 %v145, %v144
    %v158 = vpack.c.b16 %v147, %v146
    %v159 = vpack.c.b16 %v149, %v148
    %v160 = vpack.c.b16 %v151, %v150
    %v161 = vpack.c.b16 %v153, %v152
    %v171 = vrot.slane %v68, 1
    %173 = vmatprep.subr.bf16.mxu0 0
    %174 = vmatpush1.bf16.msra.mxu0 %v154
    %175 = vmatprep.subr.bf16.mxu0 0
    %176 = vmatpush1.bf16.msra.mxu0 %v155
    %177 = vmatprep.subr.bf16.mxu0 0
    %178 = vmatpush1.bf16.msra.mxu0 %v156
    %179 = vmatprep.subr.bf16.mxu0 0
    %180 = vmatpush1.bf16.msra.mxu0 %v157
    %181 = vmatprep.subr.bf16.mxu0 0
    %182 = vmatpush1.bf16.msra.mxu0 %v158
    %183 = vmatprep.subr.bf16.mxu0 0
    %184 = vmatpush1.bf16.msra.mxu0 %v159
    %185 = vmatprep.subr.bf16.mxu0 0
    %186 = vmatpush1.bf16.msra.mxu0 %v160
    %187 = vmatprep.subr.bf16.mxu0 0
    %188 = vmatpush1.bf16.msra.mxu0 %v161
    %189 = vmatprep.subr.bf16.mxu0 0
    %190 = vmatpush1.bf16.msra.mxu0 0
    %191 = vmatprep.subr.bf16.mxu0 0
    %192 = vmatpush1.bf16.msra.mxu0 0
    %193 = vmatprep.subr.bf16.mxu0 0
    %194 = vmatpush1.bf16.msra.mxu0 0
    %195 = vmatprep.subr.bf16.mxu0 0
    %196 = vmatpush1.bf16.msra.mxu0 0
    %197 = vmatprep.subr.bf16.mxu0 0
    %198 = vmatpush1.bf16.msra.mxu0 0
    %199 = vmatprep.subr.bf16.mxu0 0
    %200 = vmatpush1.bf16.msra.mxu0 0
    %201 = vmatprep.subr.bf16.mxu0 0
    %202 = vmatpush1.bf16.msra.mxu0 0
    %203 = vmatprep.subr.bf16.mxu0 0
    %204 = vmatpush1.bf16.msra.mxu0 0
    %205 = vmatprep.mubr.bf16.mxu0 0
    %206 = vmatmul.mubr.bf16.gmra.mrb[0].mxu0 %v121
    %v207 = vpop.f32.mrb[0].mxu0
    %v208 = vadd.f32 %v171, %v207
    %v209 = vpop.f32.mrb[0].mxu0
    %v210 = vpop.f32.mrb[0].mxu0
    %v211 = vpop.f32.mrb[0].mxu0
    %212 = vdwg.mxu0
    %v213 = vtanh.pop %v208
    %v214 = vpack.c.bf16 %v213, %v213
    %v231 = vunpack.c.l.b16 %v51
    %v232 = vunpack.c.l.b16 %v52
    %v233 = vunpack.c.l.b16 %v53
    %v234 = vunpack.c.l.b16 %v54
    %v235 = vunpack.c.l.b16 %v55
    %v236 = vunpack.c.l.b16 %v56
    %v237 = vunpack.c.l.b16 %v57
    %v238 = vunpack.c.l.b16 %v58
    %v239 = vunpack.c.l.b16 %v59
    %v240 = vunpack.c.l.b16 %v60
    %v241 = vunpack.c.l.b16 %v61
    %v242 = vunpack.c.l.b16 %v62
    %v243 = vunpack.c.l.b16 %v63
    %v244 = vunpack.c.l.b16 %v64
    %v245 = vunpack.c.l.b16 %v65
    %v246 = vunpack.c.l.b16 %v66
    %v247 = vpack.c.b16 %v232, %v231
    %v248 = vpack.c.b16 %v234, %v233
    %v249 = vpack.c.b16 %v236, %v235
    %v250 = vpack.c.b16 %v238, %v237
    %v251 = vpack.c.b16 %v240, %v239
    %v252 = vpack.c.b16 %v242, %v241
    %v253 = vpack.c.b16 %v244, %v243
    %v254 = vpack.c.b16 %v246, %v245
    %v263 = vrot.slane %v68, 2
    %265 = vmatprep.subr.bf16.mxu0 0
    %266 = vmatpush1.bf16.msra.mxu0 %v247
    %267 = vmatprep.subr.bf16.mxu0 0
    %268 = vmatpush1.bf16.msra.mxu0 %v248
    %269 = vmatprep.subr.bf16.mxu0 0
    %270 = vmatpush1.bf16.msra.mxu0 %v249
    %271 = vmatprep.subr.bf16.mxu0 0
    %272 = vmatpush1.bf16.msra.mxu0 %v250
    %273 = vmatprep.subr.bf16.mxu0 0
    %274 = vmatpush1.bf16.msra.mxu0 %v251
    %275 = vmatprep.subr.bf16.mxu0 0
    %276 = vmatpush1.bf16.msra.mxu0 %v252
    %277 = vmatprep.subr.bf16.mxu0 0
    %278 = vmatpush1.bf16.msra.mxu0 %v253
    %279 = vmatprep.subr.bf16.mxu0 0
    %280 = vmatpush1.bf16.msra.mxu0 %v254
    %281 = vmatprep.subr.bf16.mxu0 0
    %282 = vmatpush1.bf16.msra.mxu0 0
    %283 = vmatprep.subr.bf16.mxu0 0
    %284 = vmatpush1.bf16.msra.mxu0 0
    %285 = vmatprep.subr.bf16.mxu0 0
    %286 = vmatpush1.bf16.msra.mxu0 0
    %287 = vmatprep.subr.bf16.mxu0 0
    %288 = vmatpush1.bf16.msra.mxu0 0
    %289 = vmatprep.subr.bf16.mxu0 0
    %290 = vmatpush1.bf16.msra.mxu0 0
    %291 = vmatprep.subr.bf16.mxu0 0
    %292 = vmatpush1.bf16.msra.mxu0 0
    %293 = vmatprep.subr.bf16.mxu0 0
    %294 = vmatpush1.bf16.msra.mxu0 0
    %295 = vmatprep.subr.bf16.mxu0 0
    %296 = vmatpush1.bf16.msra.mxu0 0
    %297 = vmatprep.mubr.bf16.mxu0 0
    %298 = vmatmul.mubr.bf16.gmra.mrb[0].mxu0 %v214
    %v299 = vpop.f32.mrb[0].mxu0
    %v300 = vadd.f32 %v263, %v299
    %v301 = vpop.f32.mrb[0].mxu0
    %v302 = vpop.f32.mrb[0].mxu0
    %v303 = vpop.f32.mrb[0].mxu0
    %304 = vdwg.mxu0
    %v305 = vlaneseq
    %v306 = vand.u32 %v305, 127
    %vm307 = vcmp.lt.s32.totalorder %v306, 4
    %v308 = vsel %vm307, %v300, -inf
    %vm309 = vcmask 1040384
    %v310 = vsel %vm309, %v308, -inf
    %311 = vmax.xlane.f32.xlu0 %v310
    %v312 = vpop.xlane.xlu0 %311
    %v313 = vsub.f32 %v308, %v312
    %v314 = vmul.f32 %v313, 1.442695
    %v315 = vpow.pop %v314
    %v316 = vsel %vm309, %v315, 0.0
    %317 = vadd.xlane.f32.xlu0 %v316
    %v318 = vpop.xlane.xlu0 %317
    %v319 = vrcp.pop %v318
    %v320 = vmul.f32 %v315, %v319
    %321 = vst [vmem:[%s3] sm:$0x1] %v320
    // Predicated region
    $region14: #{actor_forward.1} parent=1 // pred_check
      _
    $region15: #{actor_forward.1} parent=1 // pred_check_branch
      %323 = sbr.rel (0) target = $region17
    $region16: #{actor_forward.1} parent=1 // pred_region
      _
    $region17: #{actor_forward.1} parent=1 // pred_fallthru
      _
    // Predicated region
    $region18: #{actor_forward.1} parent=1 // pred_check
      _
    $region19: #{actor_forward.1} parent=1 // pred_check_branch
      %325 = sbr.rel (0) target = $region21
    $region20: #{actor_forward.1} parent=1 // pred_region
      _
    $region21: #{actor_forward.1} parent=1 // pred_fallthru
      _
    %326 = vsyncpa [#allocation5], 1

</llo_original>
